<compile_context>
chip_gen: v7x
topology: tpu7x:2x2x1
jax: 0.10.0
libtpu: 0.0.40
codegen_flags: <defaults>
</compile_context>

<pallas_src>
import jax
import jax.numpy as jnp
from jax.experimental import pallas as pl
from jax.experimental.pallas import tpu as pltpu


def _spade_kernel(w_ref, x_ref, g_ref, b_ref):
    # w_ref : SMEM (2*C,) f32  -> [gamma weights | beta weights]
    # x_ref : VMEM (N, C, TS)  native dtype (bf16 / f32), TS = spatial tile (lane axis)
    # g_ref : VMEM (N, TS)     out dtype
    # b_ref : VMEM (N, TS)     out dtype
    n_ch = x_ref.shape[1]
    acc_g = None
    acc_b = None
    # Static unrolled loop over channels (C is small/static): each native-dtype strip
    # is upcast as it is consumed and feeds BOTH sums in one pass over the tile.
    for c in range(n_ch):
        xc = x_ref[:, c, :].astype(jnp.float32)          # (N, TS) strip, f32 accumulate
        wg = w_ref[c]                                    # SMEM scalar
        wb = w_ref[n_ch + c]
        gc = xc * wg
        bc = xc * wb
        acc_g = gc if acc_g is None else acc_g + gc
        acc_b = bc if acc_b is None else acc_b + bc
    g_ref[...] = acc_g.astype(g_ref.dtype)
    b_ref[...] = acc_b.astype(b_ref.dtype)


_TILE_CANDIDATES = (16384, 8192, 4096, 2048, 1024, 512, 256, 128)


def _vmem_budget_and_limit():
    """Generation-aware (tile-pick budget, scoped-VMEM limit) in bytes."""
    cap = None
    try:
        cap = getattr(pltpu.get_tpu_info(), "vmem_capacity_bytes", None)
    except Exception:
        cap = None
    if cap is None:
        cap = 64 * 1024 * 1024                       # assume the smallest VMEM (v7x)
    if cap >= 100 * 1024 * 1024:                     # v5e / v6e: 128 MiB physical
        return 48 * 1024 * 1024, 80 * 1024 * 1024
    # v7x: 64 MiB physical, 32 MiB scoped default -> stay within it.
    return 20 * 1024 * 1024, 32 * 1024 * 1024


def _pick_tile_s(S, n, c, x_itemsize, out_itemsize, vmem_budget_bytes):
    """Largest lane-dense (multiple-of-128) spatial tile that fits the VMEM budget.

    dtype-aware sublane accounting: second-minor dims pack to 32/itemsize sublanes
    (8 for f32, 16 for bf16).  Budget covers double-buffered input, two
    double-buffered outputs, and the in-kernel f32 strip + accumulators.
    Prefers >= 4 grid steps (>= 2 per v7x TensorCore) once the tile is >= 512.
    """
    s128 = -(-S // 128) * 128
    x_sub = max(8, 32 // x_itemsize)
    o_sub = max(8, 32 // out_itemsize)
    c_pad = -(-c // x_sub) * x_sub
    n_pad_out = -(-n // o_sub) * o_sub
    n_pad_f32 = -(-n // 8) * 8

    def fits(ts):
        x_bytes = 2 * n * c_pad * ts * x_itemsize            # double-buffered input
        out_bytes = 2 * 2 * n_pad_out * ts * out_itemsize    # 2 outputs, double-buffered
        tmp_bytes = 3 * n_pad_f32 * ts * 4                   # f32 strip + 2 accumulators
        return x_bytes + out_bytes + tmp_bytes <= vmem_budget_bytes

    fitting = [t for t in _TILE_CANDIDATES if t <= max(s128, 128) and fits(t)]
    if not fitting:
        return 128
    # Prefer enough grid steps for v7x megacore sharding / pipeline overlap, as long
    # as the tile stays >= 512 lanes (near the measured HBM-roofline knee).
    for t in fitting:
        if t >= 512 and pl.cdiv(S, t) >= 4:
            return t
    return fitting[0]


def get_spade(x_nchw, w_gamma, w_beta):
    """Pallas equivalent of GetSPADE.forward: returns (gamma, beta), each (N,1,H,W).

    x streams in its native dtype (bf16 stays bf16 -> half the HBM traffic),
    accumulation is f32 in-kernel, outputs match x's dtype.  No HBM-side pad or
    slice copies: reshapes are free contiguous views, ragged tails are handled
    in-kernel via the cdiv grid.
    """
    N, C, H, W = x_nchw.shape
    S = H * W

    x = x_nchw.reshape(N, C, S)                      # free contiguous collapse, no cast
    # Fused conv weights, flat for dense SMEM packing: [wg_0..wg_{C-1}, wb_0..wb_{C-1}].
    w = jnp.concatenate(
        [w_gamma.reshape(C), w_beta.reshape(C)]).astype(jnp.float32)

    out_dtype = x_nchw.dtype
    x_itemsize = jnp.dtype(x.dtype).itemsize
    out_itemsize = jnp.dtype(out_dtype).itemsize

    vmem_budget, vmem_limit = _vmem_budget_and_limit()
    tile_s = _pick_tile_s(S, N, C, x_itemsize, out_itemsize, vmem_budget)
    grid = (pl.cdiv(S, tile_s),)                     # ragged last block handled by Pallas

    # Advisory cost estimate: memory-bound streaming kernel.
    bytes_accessed = (N * C * S * x_itemsize + 2 * N * S * out_itemsize + w.size * 4)
    flops = 4 * N * C * S                            # mul + add for each of gamma/beta

    gamma, beta = pl.pallas_call(
        _spade_kernel,
        out_shape=(
            jax.ShapeDtypeStruct((N, S), out_dtype),
            jax.ShapeDtypeStruct((N, S), out_dtype),
        ),
        grid_spec=pltpu.PrefetchScalarGridSpec(
            num_scalar_prefetch=0,
            grid=grid,
            in_specs=[
                pl.BlockSpec(memory_space=pltpu.MemorySpace.SMEM),   # tiny fused weights
                pl.BlockSpec((N, C, tile_s), lambda s: (0, 0, s)),   # lane-dense x tile
            ],
            out_specs=[
                pl.BlockSpec((N, tile_s), lambda s: (0, s)),
                pl.BlockSpec((N, tile_s), lambda s: (0, s)),
            ],
        ),
        compiler_params=pltpu.CompilerParams(
            # Spatial axis is independent -> shards across TensorCores on v7x megacore.
            dimension_semantics=("parallel",),
            vmem_limit_bytes=vmem_limit,
        ),
        cost_estimate=pl.CostEstimate(
            flops=flops, transcendentals=0, bytes_accessed=bytes_accessed),
    )(w, x)

    return gamma.reshape(N, 1, H, W), beta.reshape(N, 1, H, W)


def _ref_spade(x, w_gamma, w_beta):
    xf = x.astype(jnp.float32)
    g = jnp.einsum('nchw,oc->nohw', xf, w_gamma[:, :, 0, 0].astype(jnp.float32))
    b = jnp.einsum('nchw,oc->nohw', xf, w_beta[:, :, 0, 0].astype(jnp.float32))
    return g, b


if __name__ == "__main__":
    # Small shapes consistent with the module: batch=2, dim_in=4, spatial=16x16.
    N, C, H, W = 2, 4, 16, 16

    key = jax.random.PRNGKey(0)
    kx, kg, kb = jax.random.split(key, 3)

    x = jax.random.normal(kx, (N, C, H, W), dtype=jnp.float32)
    # nn.Conv2d(dim_in, 1, 1, bias=False) weight shape: (1, dim_in, 1, 1)
    w_gamma = jax.random.normal(kg, (1, C, 1, 1), dtype=jnp.float32) * 0.1
    w_beta = jax.random.normal(kb, (1, C, 1, 1), dtype=jnp.float32) * 0.1

    # f32 path (exact check).
    gamma, beta = get_spade(x, w_gamma, w_beta)
    gamma, beta = jax.block_until_ready((gamma, beta))
    gamma_ref, beta_ref = _ref_spade(x, w_gamma, w_beta)
    assert gamma.shape == (N, 1, H, W) and beta.shape == (N, 1, H, W)
    assert jnp.allclose(gamma, gamma_ref, atol=1e-5, rtol=1e-5)
    assert jnp.allclose(beta, beta_ref, atol=1e-5, rtol=1e-5)

    # bf16 path: x streamed as bf16 (half the HBM bytes), f32 accumulation inside.
    xb = x.astype(jnp.bfloat16)
    gb, bb = jax.block_until_ready(get_spade(xb, w_gamma, w_beta))
    gb_ref, bb_ref = _ref_spade(xb, w_gamma, w_beta)
    assert gb.dtype == jnp.bfloat16 and bb.dtype == jnp.bfloat16
    assert jnp.allclose(gb.astype(jnp.float32), gb_ref, atol=2e-2, rtol=2e-2)
    assert jnp.allclose(bb.astype(jnp.float32), bb_ref, atol=2e-2, rtol=2e-2)

    # Non-multiple-of-128 spatial extent exercises the ragged (partial-block) path
    # with no wrapper-side pad/slice HBM copies.
    x2 = jax.random.normal(kx, (N, C, 10, 10), dtype=jnp.float32)
    g2, b2 = jax.block_until_ready(get_spade(x2, w_gamma, w_beta))
    g2_ref, b2_ref = _ref_spade(x2, w_gamma, w_beta)
    assert g2.shape == (N, 1, 10, 10)
    assert jnp.allclose(g2, g2_ref, atol=1e-5, rtol=1e-5)
    assert jnp.allclose(b2, b2_ref, atol=1e-5, rtol=1e-5)

    print("KERNEL_OK")
</pallas_src>

<mosaic_0001>
module attributes {stable_mosaic.version = 11 : i64} {
  func.func @_spade_kernel(%arg0: i32, %arg1: memref<8xf32, #tpu.memory_space<smem>>, %arg2: memref<2x4x256xf32, #tpu.memory_space<vmem>>, %arg3: memref<2x256xf32, #tpu.memory_space<vmem>>, %arg4: memref<2x256xf32, #tpu.memory_space<vmem>>) attributes {dimension_semantics = [#tpu.dimension_semantics<parallel>], iteration_bounds = array<i64: 1>, scalar_prefetch = 0 : i64, scratch_operands = 0 : i64, tpu.core_type = #tpu.core_type<tc>, window_params = [{transform_indices = @transform_0, window_bounds = array<i64: 8>}, {transform_indices = @transform_1, window_bounds = array<i64: 2, 4, 256>}, {transform_indices = @transform_2, window_bounds = array<i64: 2, 256>}, {transform_indices = @transform_3, window_bounds = array<i64: 2, 256>}]} {
    %c0 = arith.constant 0 : index
    %c0_0 = arith.constant 0 : index
    %c0_1 = arith.constant 0 : index
    %0 = vector.load %arg2[%c0, %c0_0, %c0_1] : memref<2x4x256xf32, #tpu.memory_space<vmem>>, vector<2x1x256xf32>
    %1 = vector.shape_cast %0 : vector<2x1x256xf32> to vector<2x256xf32>
    %c0_2 = arith.constant 0 : index
    %2 = memref.load %arg1[%c0_2] : memref<8xf32, #tpu.memory_space<smem>>
    %c4 = arith.constant 4 : index
    %3 = memref.load %arg1[%c4] : memref<8xf32, #tpu.memory_space<smem>>
    %4 = vector.broadcast %2 : f32 to vector<2x256xf32>
    %5 = arith.mulf %1, %4 : vector<2x256xf32>
    %6 = vector.broadcast %3 : f32 to vector<2x256xf32>
    %7 = arith.mulf %1, %6 : vector<2x256xf32>
    %c0_3 = arith.constant 0 : index
    %c1 = arith.constant 1 : index
    %c0_4 = arith.constant 0 : index
    %8 = vector.load %arg2[%c0_3, %c1, %c0_4] : memref<2x4x256xf32, #tpu.memory_space<vmem>>, vector<2x1x256xf32>
    %9 = vector.shape_cast %8 : vector<2x1x256xf32> to vector<2x256xf32>
    %c1_5 = arith.constant 1 : index
    %10 = memref.load %arg1[%c1_5] : memref<8xf32, #tpu.memory_space<smem>>
    %c5 = arith.constant 5 : index
    %11 = memref.load %arg1[%c5] : memref<8xf32, #tpu.memory_space<smem>>
    %12 = vector.broadcast %10 : f32 to vector<2x256xf32>
    %13 = arith.mulf %9, %12 : vector<2x256xf32>
    %14 = vector.broadcast %11 : f32 to vector<2x256xf32>
    %15 = arith.mulf %9, %14 : vector<2x256xf32>
    %16 = arith.addf %5, %13 : vector<2x256xf32>
    %17 = arith.addf %7, %15 : vector<2x256xf32>
    %c0_6 = arith.constant 0 : index
    %c2 = arith.constant 2 : index
    %c0_7 = arith.constant 0 : index
    %18 = vector.load %arg2[%c0_6, %c2, %c0_7] : memref<2x4x256xf32, #tpu.memory_space<vmem>>, vector<2x1x256xf32>
    %19 = vector.shape_cast %18 : vector<2x1x256xf32> to vector<2x256xf32>
    %c2_8 = arith.constant 2 : index
    %20 = memref.load %arg1[%c2_8] : memref<8xf32, #tpu.memory_space<smem>>
    %c6 = arith.constant 6 : index
    %21 = memref.load %arg1[%c6] : memref<8xf32, #tpu.memory_space<smem>>
    %22 = vector.broadcast %20 : f32 to vector<2x256xf32>
    %23 = arith.mulf %19, %22 : vector<2x256xf32>
    %24 = vector.broadcast %21 : f32 to vector<2x256xf32>
    %25 = arith.mulf %19, %24 : vector<2x256xf32>
    %26 = arith.addf %16, %23 : vector<2x256xf32>
    %27 = arith.addf %17, %25 : vector<2x256xf32>
    %c0_9 = arith.constant 0 : index
    %c3 = arith.constant 3 : index
    %c0_10 = arith.constant 0 : index
    %28 = vector.load %arg2[%c0_9, %c3, %c0_10] : memref<2x4x256xf32, #tpu.memory_space<vmem>>, vector<2x1x256xf32>
    %29 = vector.shape_cast %28 : vector<2x1x256xf32> to vector<2x256xf32>
    %c3_11 = arith.constant 3 : index
    %30 = memref.load %arg1[%c3_11] : memref<8xf32, #tpu.memory_space<smem>>
    %c7 = arith.constant 7 : index
    %31 = memref.load %arg1[%c7] : memref<8xf32, #tpu.memory_space<smem>>
    %32 = vector.broadcast %30 : f32 to vector<2x256xf32>
    %33 = arith.mulf %29, %32 : vector<2x256xf32>
    %34 = vector.broadcast %31 : f32 to vector<2x256xf32>
    %35 = arith.mulf %29, %34 : vector<2x256xf32>
    %36 = arith.addf %26, %33 : vector<2x256xf32>
    %37 = arith.addf %27, %35 : vector<2x256xf32>
    %c0_12 = arith.constant 0 : index
    %c0_13 = arith.constant 0 : index
    %38 = vector.load %arg3[%c0_12, %c0_13] : memref<2x256xf32, #tpu.memory_space<vmem>>, vector<2x256xf32>
    tpu.vector_store %arg3[%c0_12, %c0_13], %36 {strides = array<i32>} : memref<2x256xf32, #tpu.memory_space<vmem>>, vector<2x256xf32>,
    %c0_14 = arith.constant 0 : index
    %c0_15 = arith.constant 0 : index
    %39 = vector.load %arg4[%c0_14, %c0_15] : memref<2x256xf32, #tpu.memory_space<vmem>>, vector<2x256xf32>
    tpu.vector_store %arg4[%c0_14, %c0_15], %37 {strides = array<i32>} : memref<2x256xf32, #tpu.memory_space<vmem>>, vector<2x256xf32>,
    return
  }
  func.func @transform_0(%arg0: i32) -> i32 {
    %c0_i32 = arith.constant 0 : i32
    %c0_i32_0 = arith.constant 0 : i32
    return %c0_i32 : i32
  }
  func.func @transform_1(%arg0: i32) -> (i32, i32, i32) {
    %c0_i32 = arith.constant 0 : i32
    %c0_i32_0 = arith.constant 0 : i32
    %c0_i32_1 = arith.constant 0 : i32
    return %c0_i32, %c0_i32_0, %arg0 : i32, i32, i32
  }
  func.func @transform_2(%arg0: i32) -> (i32, i32) {
    %c0_i32 = arith.constant 0 : i32
    %c0_i32_0 = arith.constant 0 : i32
    return %c0_i32, %arg0 : i32, i32
  }
  func.func @transform_3(%arg0: i32) -> (i32, i32) {
    %c0_i32 = arith.constant 0 : i32
    %c0_i32_0 = arith.constant 0 : i32
    return %c0_i32, %arg0 : i32, i32
  }
}

</mosaic_0001>

<llo_original>
// kernel: tpu_custom_call.1
$region0: #{tpu_custom_call.1}
  #allocation0 [shape = 'u32[]', space=smem, size = 0x4, offset = 0x4, fixed_abs, tag = 'smem constant byte address 0x4 - core index']
  #allocation1 [shape = 'u32[144,128]{1,0:T(1,128)}', space=vmem, size = 0x12000, scoped, tag = 'internal scratch']
  %s0 = inlined_call_operand.hbm [shape: f32[8], index: 0, kind: input, shape index: {}]
  %s1 = inlined_call_operand.hbm [shape: f32[2,4,256], index: 1, kind: input, shape index: {}]
  %s2 = inlined_call_operand.hbm [shape: f32[2,256], index: 2, kind: output, shape index: {0}]
  %s3 = inlined_call_operand.hbm [shape: f32[2,256], index: 3, kind: output, shape index: {1}]
  %4 = xla_tuple %s2, %s3
  %s5 = sld [smem:[#allocation0]]
  $region34: #{tpu_custom_call.1} parent=0
    _
  %s7 = ssub.s32 1, %s5
  %s8 = scalar_select 0, %s7, %s5
  $region1: #{tpu_custom_call.1} parent=0
    #allocation2 [shape = 'u8[512]{0}', space=smem, size = 0x200, scoped, tag = 'input window, operand 0, single buffered']
    #allocation3 [shape = 's32[1]{0}', space=sflag, size = 0x4, scoped, tag = 'scoped memory for tpu_custom_call.1']
    #allocation4 [shape = 's32[1]{0}', space=sflag, size = 0x4, scoped, tag = 'scoped memory for tpu_custom_call.1']
    #allocation5 [shape = 's32[1]{0}', space=sflag, size = 0x4, scoped, tag = 'scoped memory for tpu_custom_call.1']
    #allocation6 [shape = 'u8[8192]{0}', space=vmem, size = 0x2000, scoped, tag = 'input window, operand 1, single buffered']
    #allocation7 [shape = 'u8[2048]{0}', space=vmem, size = 0x800, scoped, tag = 'output window, operand 0, single buffered']
    #allocation8 [shape = 'u8[2048]{0}', space=vmem, size = 0x800, scoped, tag = 'output window, operand 1, single buffered']
    #allocation9 [shape = 's32[1]{0}', space=sflag, size = 0x4, scoped, tag = 'scoped memory for tpu_custom_call.1']
    %9 = vsyncpa [#allocation5], 0
    %10 = vsyncpa [#allocation3], 0
    %11 = vsyncpa [#allocation4], 0
    %12 = vsyncpa [#allocation9], 0
    // Predicated region
    $region2: #{tpu_custom_call.1} parent=1 // pred_check
      _
    $region3: #{tpu_custom_call.1} parent=1 // pred_check_branch
      %14 = sbr.rel (0) target = $region5
    $region4: #{tpu_custom_call.1} parent=1 // pred_region
      %s16 = ssub.s32 16, 16
      %17 = vsyncadd [#allocation5], %s16
      %20 = dma.hbm_to_smem %s0, 16, [#allocation2], [#allocation5]
    $region5: #{tpu_custom_call.1} parent=1 // pred_fallthru
      _
    // Predicated region
    $region6: #{tpu_custom_call.1} parent=1 // pred_check
      _
    $region7: #{tpu_custom_call.1} parent=1 // pred_check_branch
      %22 = sbr.rel (0) target = $region9
    $region8: #{tpu_custom_call.1} parent=1 // pred_region
      %s24 = ssub.s32 256, 256
      %25 = vsyncadd [#allocation3], %s24
      %s26 = sshll.u32 [#allocation6], 4
      %s27 = int_to_ptr.vmem [resolvable:$true] %s26
      %32 = dma.hbm_to_vmem [thread:$0]  %s1, 256, %s27, [#allocation3], 128, 128, 8
    $region9: #{tpu_custom_call.1} parent=1 // pred_fallthru
      _
    // Predicated region
    $region10: #{tpu_custom_call.1} parent=1 // pred_check
      _
    $region11: #{tpu_custom_call.1} parent=1 // pred_check_branch
      %34 = sbr.rel (0) target = $region13
    $region12: #{tpu_custom_call.1} parent=1 // pred_region
      %35 = dma.done [#allocation5], 16
    $region13: #{tpu_custom_call.1} parent=1 // pred_fallthru
      _
    // Predicated region
    $region14: #{tpu_custom_call.1} parent=1 // pred_check
      _
    $region15: #{tpu_custom_call.1} parent=1 // pred_check_branch
      %37 = sbr.rel (0) target = $region17
    $region16: #{tpu_custom_call.1} parent=1 // pred_region
      %38 = dma.done [#allocation3], 256
    $region17: #{tpu_custom_call.1} parent=1 // pred_fallthru
      _
    %39 = sfence
    %v40 = vld [vmem:[#allocation6] ss:$4 sm:$0x3]
    %s41 = scalar_lea.vmem [#allocation6], 8
    %v42 = vld [vmem:[%s41] ss:$4 sm:$0x3]
    %s43 = sld [smem:[#allocation2]]
    %s44 = sld [smem:[#allocation2 + $0x4]]
    %v45 = vstv %s43
    %v46 = vmul.f32 %v40, %v45
    %v47 = vmul.f32 %v42, %v45
    %v48 = vstv %s44
    %v49 = vmul.f32 %v40, %v48
    %v50 = vmul.f32 %v42, %v48
    %s51 = scalar_lea.vmem [#allocation6], 1
    %v52 = vld [vmem:[%s51] ss:$4 sm:$0x3]
    %s53 = scalar_lea.vmem [#allocation6], 9
    %v54 = vld [vmem:[%s53] ss:$4 sm:$0x3]
    %s55 = sld [smem:[#allocation2 + $0x1]]
    %s56 = sld [smem:[#allocation2 + $0x5]]
    %v57 = vstv %s55
    %v58 = vmul.f32 %v52, %v57
    %v59 = vmul.f32 %v54, %v57
    %v60 = vstv %s56
    %v61 = vmul.f32 %v52, %v60
    %v62 = vmul.f32 %v54, %v60
    %v63 = vadd.f32 %v46, %v58
    %v64 = vadd.f32 %v47, %v59
    %v65 = vadd.f32 %v49, %v61
    %v66 = vadd.f32 %v50, %v62
    %s67 = scalar_lea.vmem [#allocation6], 2
    %v68 = vld [vmem:[%s67] ss:$4 sm:$0x3]
    %s69 = scalar_lea.vmem [#allocation6], 10
    %v70 = vld [vmem:[%s69] ss:$4 sm:$0x3]
    %s71 = sld [smem:[#allocation2 + $0x2]]
    %s72 = sld [smem:[#allocation2 + $0x6]]
    %v73 = vstv %s71
    %v74 = vmul.f32 %v68, %v73
    %v75 = vmul.f32 %v70, %v73
    %v76 = vstv %s72
    %v77 = vmul.f32 %v68, %v76
    %v78 = vmul.f32 %v70, %v76
    %v79 = vadd.f32 %v63, %v74
    %v80 = vadd.f32 %v64, %v75
    %v81 = vadd.f32 %v65, %v77
    %v82 = vadd.f32 %v66, %v78
    %s83 = scalar_lea.vmem [#allocation6], 3
    %v84 = vld [vmem:[%s83] ss:$4 sm:$0x3]
    %s85 = scalar_lea.vmem [#allocation6], 11
    %v86 = vld [vmem:[%s85] ss:$4 sm:$0x3]
    %s87 = sld [smem:[#allocation2 + $0x3]]
    %s88 = sld [smem:[#allocation2 + $0x7]]
    %v89 = vstv %s87
    %v90 = vmul.f32 %v84, %v89
    %v91 = vmul.f32 %v86, %v89
    %v92 = vstv %s88
    %v93 = vmul.f32 %v84, %v92
    %v94 = vmul.f32 %v86, %v92
    %v95 = vadd.f32 %v79, %v90
    %v96 = vadd.f32 %v80, %v91
    %v97 = vadd.f32 %v81, %v93
    %v98 = vadd.f32 %v82, %v94
    %v101 = vcombine.low %v95, %v96
    %v103 = vunpack.c.l.s4 1935823168
    %v104 = vunpack.c.0.s8 %v103
    %v105 = vlaneseq
    %v106 = vshrl.u32 %v105, 7
    %v107 = vsub.s32 %v104, %v106
    %v108 = vrot.slane %v101, %v107
    %110 = vst [vmem:[#allocation7] sm:$0xf] %v108
    %v113 = vcombine.low %v97, %v98
    %v115 = vunpack.c.l.s4 1935823168
    %v116 = vunpack.c.0.s8 %v115
    %v117 = vlaneseq
    %v118 = vshrl.u32 %v117, 7
    %v119 = vsub.s32 %v116, %v118
    %v120 = vrot.slane %v113, %v119
    %122 = vst [vmem:[#allocation8] sm:$0xf] %v120
    // Predicated region
    $region18: #{tpu_custom_call.1} parent=1 // pred_check
      _
    $region19: #{tpu_custom_call.1} parent=1 // pred_check_branch
      %124 = sbr.rel (0) target = $region21
    $region20: #{tpu_custom_call.1} parent=1 // pred_region
      %s126 = ssub.s32 64, 64
      %127 = vsyncadd [#allocation4], %s126
      %s129 = sshll.u32 [#allocation7], 4
      %s130 = int_to_ptr.vmem [resolvable:$true] %s129
      %132 = dma.vmem_to_hbm [thread:$0]  %s130, 64, %s2, [#allocation4]
    $region21: #{tpu_custom_call.1} parent=1 // pred_fallthru
      _
    // Predicated region
    $region22: #{tpu_custom_call.1} parent=1 // pred_check
      _
    $region23: #{tpu_custom_call.1} parent=1 // pred_check_branch
      %134 = sbr.rel (0) target = $region25
    $region24: #{tpu_custom_call.1} parent=1 // pred_region
      %s136 = ssub.s32 64, 64
      %137 = vsyncadd [#allocation9], %s136
      %s139 = sshll.u32 [#allocation8], 4
      %s140 = int_to_ptr.vmem [resolvable:$true] %s139
      %142 = dma.vmem_to_hbm [thread:$0]  %s140, 64, %s3, [#allocation9]
    $region25: #{tpu_custom_call.1} parent=1 // pred_fallthru
      _
    // Predicated region
    $region26: #{tpu_custom_call.1} parent=1 // pred_check
      _
    $region27: #{tpu_custom_call.1} parent=1 // pred_check_branch
      %144 = sbr.rel (0) target = $region29
    $region28: #{tpu_custom_call.1} parent=1 // pred_region
      %145 = dma.done [#allocation4], 64
    $region29: #{tpu_custom_call.1} parent=1 // pred_fallthru
      _
    // Predicated region
    $region30: #{tpu_custom_call.1} parent=1 // pred_check
      _
    $region31: #{tpu_custom_call.1} parent=1 // pred_check_branch
      %147 = sbr.rel (0) target = $region33
    $region32: #{tpu_custom_call.1} parent=1 // pred_region
      %148 = dma.done [#allocation9], 64
    $region33: #{tpu_custom_call.1} parent=1 // pred_fallthru
      _
    %149 = vsyncpa [#allocation3], 1
    %150 = vsyncpa [#allocation4], 1
    %151 = vsyncpa [#allocation9], 1
    %152 = vsyncpa [#allocation5], 1

</llo_original>
